<compile_context>
chip_gen: v6e
topology: v6e:2x2x1
jax: 0.10.0
libtpu: 0.0.40
codegen_flags: <defaults>
</compile_context>

<pallas_src>
import functools

import jax
import jax.numpy as jnp
from jax.experimental import pallas as pl
from jax.experimental.pallas import tpu as pltpu

LEAKY_SLOPE = 0.01  # nn.LeakyReLU default negative_slope
BN_EPS = 1e-5       # nn.BatchNorm1d default eps
LANE = 128
SUBLANE = 8


def _round_up(n, m):
    return ((n + m - 1) // m) * m


def _feature_model_kernel(x_ref, w_ref, vec_ref, out_ref, *,
                          num_layers, num_classes, batch):
    """Whole MLP forward on one resident (B_pad, P) activation tile.

    x_ref  : (B_pad, P)            padded input activations
    w_ref  : (L[+1], P, P)         zero-padded, pre-transposed weights (x @ W)
    vec_ref: (3*L[+1], P)          rows: [b_l, gamma_l, beta_l]*L (+ classifier bias)
    out_ref: (B_pad, P)            padded output
    """
    B_pad, P = x_ref.shape
    inv_batch = 1.0 / float(batch)

    # Rows >= batch are padding; exclude them from the BatchNorm statistics.
    row_mask = jax.lax.broadcasted_iota(jnp.int32, (B_pad, P), 0) < batch

    h = x_ref[...]  # f32

    for l in range(num_layers):
        w = w_ref[l]                                  # (P, P)
        b = vec_ref[3 * l:3 * l + 1, :]               # (1, P)
        gamma = vec_ref[3 * l + 1:3 * l + 2, :]       # (1, P)
        beta = vec_ref[3 * l + 2:3 * l + 3, :]        # (1, P)

        # Linear + bias (MXU)
        h = jnp.dot(h, w, preferred_element_type=jnp.float32) + b
        # LeakyReLU
        h = jnp.where(h >= 0, h, LEAKY_SLOPE * h)

        # BatchNorm1d, training-mode statistics over the real rows only.
        hm = jnp.where(row_mask, h, 0.0)
        mean = jnp.sum(hm, axis=0, keepdims=True) * inv_batch
        centered = h - mean
        var = jnp.sum(jnp.where(row_mask, centered * centered, 0.0),
                      axis=0, keepdims=True) * inv_batch
        scale = gamma * jax.lax.rsqrt(var + BN_EPS)   # zero in padded lanes (gamma==0)
        shift = beta - mean * scale
        h = h * scale + shift

    if num_classes > 0:
        wc = w_ref[num_layers]
        bc = vec_ref[3 * num_layers:3 * num_layers + 1, :]
        h = jnp.dot(h, wc, preferred_element_type=jnp.float32) + bc

    out_ref[...] = h


def init_params(key, input_feature_dim, num_layers=2, num_units=64, num_classes=36):
    """Deterministic synthetic parameters (same shapes as the PyTorch module;
    Linear weights are stored pre-transposed as (in_features, out_features))."""
    params = []
    in_dim = input_feature_dim
    for _ in range(num_layers):
        key, kw, kb = jax.random.split(key, 3)
        w = jax.random.normal(kw, (in_dim, num_units), jnp.float32) * (1.0 / jnp.sqrt(in_dim))
        b = jax.random.normal(kb, (num_units,), jnp.float32) * 0.01
        gamma = jnp.ones((num_units,), jnp.float32)
        beta = jnp.zeros((num_units,), jnp.float32)
        params += [w, b, gamma, beta]
        in_dim = num_units
    if num_classes > 0:
        key, kw, kb = jax.random.split(key, 3)
        wc = jax.random.normal(kw, (in_dim, num_classes), jnp.float32) * (1.0 / jnp.sqrt(in_dim))
        bc = jax.random.normal(kb, (num_classes,), jnp.float32) * 0.01
        params += [wc, bc]
    return params


def pack_params(params, input_feature_dim, num_layers=2, num_units=64, num_classes=36):
    """Pack all parameters into two lane-dense, zero-padded slabs."""
    P = _round_up(max(input_feature_dim, num_units, max(num_classes, 1)), LANE)
    n_mats = num_layers + (1 if num_classes > 0 else 0)
    n_vecs = 3 * num_layers + (1 if num_classes > 0 else 0)

    w_slab = jnp.zeros((n_mats, P, P), jnp.float32)
    vec_slab = jnp.zeros((n_vecs, P), jnp.float32)

    in_dim = input_feature_dim
    for l in range(num_layers):
        w, b, gamma, beta = params[4 * l: 4 * l + 4]
        w_slab = w_slab.at[l, :in_dim, :num_units].set(w)
        vec_slab = vec_slab.at[3 * l, :num_units].set(b.reshape(-1))
        vec_slab = vec_slab.at[3 * l + 1, :num_units].set(gamma.reshape(-1))
        vec_slab = vec_slab.at[3 * l + 2, :num_units].set(beta.reshape(-1))
        in_dim = num_units
    if num_classes > 0:
        wc, bc = params[4 * num_layers], params[4 * num_layers + 1]
        w_slab = w_slab.at[num_layers, :in_dim, :num_classes].set(wc)
        vec_slab = vec_slab.at[3 * num_layers, :num_classes].set(bc.reshape(-1))
    return w_slab, vec_slab


def feature_model_forward(x, w_slab, vec_slab, *,
                          num_layers=2, num_units=64, num_classes=36):
    batch, feat = x.shape
    P = w_slab.shape[-1]
    B_pad = _round_up(max(batch, SUBLANE), SUBLANE)
    out_dim = num_classes if num_classes > 0 else num_units

    # Pad input to a full (sublane, lane) tile; padded region is zero.
    x_pad = jnp.zeros((B_pad, P), jnp.float32).at[:batch, :feat].set(x.astype(jnp.float32))

    kernel = functools.partial(_feature_model_kernel, num_layers=num_layers,
                               num_classes=num_classes, batch=batch)

    vmem = pl.BlockSpec(memory_space=pltpu.MemorySpace.VMEM)
    out_pad = pl.pallas_call(
        kernel,
        out_shape=jax.ShapeDtypeStruct((B_pad, P), jnp.float32),
        in_specs=[vmem, vmem, vmem],
        out_specs=vmem,
    )(x_pad, w_slab, vec_slab)

    return out_pad[:batch, :out_dim]


def feature_model_reference(x, params, num_layers=2, num_classes=36):
    """Pure-JAX reference (unpadded) for correctness checking."""
    h = x.astype(jnp.float32)
    for l in range(num_layers):
        w, b, gamma, beta = params[4 * l: 4 * l + 4]
        h = h @ w + b
        h = jnp.where(h >= 0, h, LEAKY_SLOPE * h)
        mean = jnp.mean(h, axis=0, keepdims=True)
        var = jnp.mean((h - mean) ** 2, axis=0, keepdims=True)
        h = (h - mean) / jnp.sqrt(var + BN_EPS) * gamma + beta
    if num_classes > 0:
        wc, bc = params[4 * num_layers], params[4 * num_layers + 1]
        h = h @ wc + bc
    return h


if __name__ == "__main__":
    # Module's build_block assumes (b=4, input_feature_dim).
    batch = 4
    input_feature_dim = 32
    num_layers = 2
    num_units = 64
    num_classes = 36

    key = jax.random.PRNGKey(0)
    kx, kp = jax.random.split(key)
    x = jax.random.normal(kx, (batch, input_feature_dim), jnp.float32)
    params = init_params(kp, input_feature_dim, num_layers, num_units, num_classes)
    w_slab, vec_slab = pack_params(params, input_feature_dim, num_layers, num_units, num_classes)

    out = feature_model_forward(x, w_slab, vec_slab,
                                num_layers=num_layers, num_units=num_units,
                                num_classes=num_classes)
    out = jax.block_until_ready(out)

    ref = feature_model_reference(x, params, num_layers, num_classes)
    assert out.shape == (batch, num_classes), out.shape
    err = float(jnp.max(jnp.abs(out - ref)))
    assert jnp.allclose(out, ref, atol=2e-4, rtol=2e-4), err

    print("KERNEL_OK")
</pallas_src>

<mosaic_0001>
module attributes {stable_mosaic.version = 11 : i64} {
  func.func @_feature_model_kernel(%arg0: memref<8x128xf32, #tpu.memory_space<vmem>>, %arg1: memref<3x128x128xf32, #tpu.memory_space<vmem>>, %arg2: memref<7x128xf32, #tpu.memory_space<vmem>>, %arg3: memref<8x128xf32, #tpu.memory_space<vmem>>) attributes {dimension_semantics = [], scalar_prefetch = 0 : i64, scratch_operands = 0 : i64, tpu.core_type = #tpu.core_type<tc>} {
    %0 = tpu.iota {dimensions = array<i32: 0>} : vector<8x128xi32>
    %c4_i32 = arith.constant 4 : i32
    %1 = vector.broadcast %c4_i32 : i32 to vector<8x128xi32>
    %2 = arith.cmpi slt, %0, %1 : vector<8x128xi32>
    %c0 = arith.constant 0 : index
    %c0_0 = arith.constant 0 : index
    %3 = vector.load %arg0[%c0, %c0_0] : memref<8x128xf32, #tpu.memory_space<vmem>>, vector<8x128xf32>
    %c0_1 = arith.constant 0 : index
    %c0_2 = arith.constant 0 : index
    %c0_3 = arith.constant 0 : index
    %4 = vector.load %arg1[%c0_1, %c0_2, %c0_3] : memref<3x128x128xf32, #tpu.memory_space<vmem>>, vector<1x128x128xf32>
    %5 = vector.shape_cast %4 : vector<1x128x128xf32> to vector<128x128xf32>
    %c0_4 = arith.constant 0 : index
    %c0_5 = arith.constant 0 : index
    %6 = vector.load %arg2[%c0_4, %c0_5] : memref<7x128xf32, #tpu.memory_space<vmem>>, vector<1x128xf32>
    %c1 = arith.constant 1 : index
    %c0_6 = arith.constant 0 : index
    %7 = vector.load %arg2[%c1, %c0_6] : memref<7x128xf32, #tpu.memory_space<vmem>>, vector<1x128xf32>
    %c2 = arith.constant 2 : index
    %c0_7 = arith.constant 0 : index
    %8 = vector.load %arg2[%c2, %c0_7] : memref<7x128xf32, #tpu.memory_space<vmem>>, vector<1x128xf32>
    %cst = arith.constant dense<0.000000e+00> : vector<8x128xf32>
    %9 = tpu.matmul %3, %5, %cst {dimension_numbers = #tpu.dot_dimension_numbers<[1], [0], [0], [1], [0, 0, 1, 1], [], []>} : vector<8x128xf32>, vector<128x128xf32>, vector<8x128xf32> -> vector<8x128xf32>
    %10 = vector.broadcast %6 : vector<1x128xf32> to vector<8x128xf32>
    %11 = arith.addf %9, %10 : vector<8x128xf32>
    %cst_8 = arith.constant 0.000000e+00 : f32
    %12 = vector.broadcast %cst_8 : f32 to vector<8x128xf32>
    %13 = arith.cmpf oge, %11, %12 : vector<8x128xf32>
    %cst_9 = arith.constant 0.00999999977 : f32
    %14 = vector.broadcast %cst_9 : f32 to vector<8x128xf32>
    %15 = arith.mulf %14, %11 : vector<8x128xf32>
    %16 = arith.select %13, %11, %15 : vector<8x128xi1>, vector<8x128xf32>
    %cst_10 = arith.constant 0.000000e+00 : f32
    %17 = vector.broadcast %cst_10 : f32 to vector<8x128xf32>
    %18 = arith.select %2, %16, %17 : vector<8x128xi1>, vector<8x128xf32>
    %cst_11 = arith.constant dense<0.000000e+00> : vector<128xf32>
    %19 = vector.multi_reduction <add>, %18, %cst_11 [0] : vector<8x128xf32> to vector<128xf32>
    %20 = vector.shape_cast %19 : vector<128xf32> to vector<1x128xf32>
    %cst_12 = arith.constant 2.500000e-01 : f32
    %21 = vector.broadcast %cst_12 : f32 to vector<1x128xf32>
    %22 = arith.mulf %20, %21 : vector<1x128xf32>
    %23 = vector.broadcast %22 : vector<1x128xf32> to vector<8x128xf32>
    %24 = arith.subf %16, %23 : vector<8x128xf32>
    %25 = arith.mulf %24, %24 : vector<8x128xf32>
    %cst_13 = arith.constant 0.000000e+00 : f32
    %26 = vector.broadcast %cst_13 : f32 to vector<8x128xf32>
    %27 = arith.select %2, %25, %26 : vector<8x128xi1>, vector<8x128xf32>
    %cst_14 = arith.constant dense<0.000000e+00> : vector<128xf32>
    %28 = vector.multi_reduction <add>, %27, %cst_14 [0] : vector<8x128xf32> to vector<128xf32>
    %29 = vector.shape_cast %28 : vector<128xf32> to vector<1x128xf32>
    %cst_15 = arith.constant 2.500000e-01 : f32
    %30 = vector.broadcast %cst_15 : f32 to vector<1x128xf32>
    %31 = arith.mulf %29, %30 : vector<1x128xf32>
    %cst_16 = arith.constant 9.99999974E-6 : f32
    %32 = vector.broadcast %cst_16 : f32 to vector<1x128xf32>
    %33 = arith.addf %31, %32 : vector<1x128xf32>
    %34 = math.rsqrt %33 : vector<1x128xf32>
    %35 = arith.mulf %7, %34 : vector<1x128xf32>
    %36 = arith.mulf %22, %35 : vector<1x128xf32>
    %37 = arith.subf %8, %36 : vector<1x128xf32>
    %38 = vector.broadcast %35 : vector<1x128xf32> to vector<8x128xf32>
    %39 = arith.mulf %16, %38 : vector<8x128xf32>
    %40 = vector.broadcast %37 : vector<1x128xf32> to vector<8x128xf32>
    %41 = arith.addf %39, %40 : vector<8x128xf32>
    %c1_17 = arith.constant 1 : index
    %c0_18 = arith.constant 0 : index
    %c0_19 = arith.constant 0 : index
    %42 = vector.load %arg1[%c1_17, %c0_18, %c0_19] : memref<3x128x128xf32, #tpu.memory_space<vmem>>, vector<1x128x128xf32>
    %43 = vector.shape_cast %42 : vector<1x128x128xf32> to vector<128x128xf32>
    %c3 = arith.constant 3 : index
    %c0_20 = arith.constant 0 : index
    %44 = vector.load %arg2[%c3, %c0_20] : memref<7x128xf32, #tpu.memory_space<vmem>>, vector<1x128xf32>
    %c4 = arith.constant 4 : index
    %c0_21 = arith.constant 0 : index
    %45 = vector.load %arg2[%c4, %c0_21] : memref<7x128xf32, #tpu.memory_space<vmem>>, vector<1x128xf32>
    %c5 = arith.constant 5 : index
    %c0_22 = arith.constant 0 : index
    %46 = vector.load %arg2[%c5, %c0_22] : memref<7x128xf32, #tpu.memory_space<vmem>>, vector<1x128xf32>
    %cst_23 = arith.constant dense<0.000000e+00> : vector<8x128xf32>
    %47 = tpu.matmul %41, %43, %cst_23 {dimension_numbers = #tpu.dot_dimension_numbers<[1], [0], [0], [1], [0, 0, 1, 1], [], []>} : vector<8x128xf32>, vector<128x128xf32>, vector<8x128xf32> -> vector<8x128xf32>
    %48 = vector.broadcast %44 : vector<1x128xf32> to vector<8x128xf32>
    %49 = arith.addf %47, %48 : vector<8x128xf32>
    %cst_24 = arith.constant 0.000000e+00 : f32
    %50 = vector.broadcast %cst_24 : f32 to vector<8x128xf32>
    %51 = arith.cmpf oge, %49, %50 : vector<8x128xf32>
    %cst_25 = arith.constant 0.00999999977 : f32
    %52 = vector.broadcast %cst_25 : f32 to vector<8x128xf32>
    %53 = arith.mulf %52, %49 : vector<8x128xf32>
    %54 = arith.select %51, %49, %53 : vector<8x128xi1>, vector<8x128xf32>
    %cst_26 = arith.constant 0.000000e+00 : f32
    %55 = vector.broadcast %cst_26 : f32 to vector<8x128xf32>
    %56 = arith.select %2, %54, %55 : vector<8x128xi1>, vector<8x128xf32>
    %cst_27 = arith.constant dense<0.000000e+00> : vector<128xf32>
    %57 = vector.multi_reduction <add>, %56, %cst_27 [0] : vector<8x128xf32> to vector<128xf32>
    %58 = vector.shape_cast %57 : vector<128xf32> to vector<1x128xf32>
    %cst_28 = arith.constant 2.500000e-01 : f32
    %59 = vector.broadcast %cst_28 : f32 to vector<1x128xf32>
    %60 = arith.mulf %58, %59 : vector<1x128xf32>
    %61 = vector.broadcast %60 : vector<1x128xf32> to vector<8x128xf32>
    %62 = arith.subf %54, %61 : vector<8x128xf32>
    %63 = arith.mulf %62, %62 : vector<8x128xf32>
    %cst_29 = arith.constant 0.000000e+00 : f32
    %64 = vector.broadcast %cst_29 : f32 to vector<8x128xf32>
    %65 = arith.select %2, %63, %64 : vector<8x128xi1>, vector<8x128xf32>
    %cst_30 = arith.constant dense<0.000000e+00> : vector<128xf32>
    %66 = vector.multi_reduction <add>, %65, %cst_30 [0] : vector<8x128xf32> to vector<128xf32>
    %67 = vector.shape_cast %66 : vector<128xf32> to vector<1x128xf32>
    %cst_31 = arith.constant 2.500000e-01 : f32
    %68 = vector.broadcast %cst_31 : f32 to vector<1x128xf32>
    %69 = arith.mulf %67, %68 : vector<1x128xf32>
    %cst_32 = arith.constant 9.99999974E-6 : f32
    %70 = vector.broadcast %cst_32 : f32 to vector<1x128xf32>
    %71 = arith.addf %69, %70 : vector<1x128xf32>
    %72 = math.rsqrt %71 : vector<1x128xf32>
    %73 = arith.mulf %45, %72 : vector<1x128xf32>
    %74 = arith.mulf %60, %73 : vector<1x128xf32>
    %75 = arith.subf %46, %74 : vector<1x128xf32>
    %76 = vector.broadcast %73 : vector<1x128xf32> to vector<8x128xf32>
    %77 = arith.mulf %54, %76 : vector<8x128xf32>
    %78 = vector.broadcast %75 : vector<1x128xf32> to vector<8x128xf32>
    %79 = arith.addf %77, %78 : vector<8x128xf32>
    %c2_33 = arith.constant 2 : index
    %c0_34 = arith.constant 0 : index
    %c0_35 = arith.constant 0 : index
    %80 = vector.load %arg1[%c2_33, %c0_34, %c0_35] : memref<3x128x128xf32, #tpu.memory_space<vmem>>, vector<1x128x128xf32>
    %81 = vector.shape_cast %80 : vector<1x128x128xf32> to vector<128x128xf32>
    %c6 = arith.constant 6 : index
    %c0_36 = arith.constant 0 : index
    %82 = vector.load %arg2[%c6, %c0_36] : memref<7x128xf32, #tpu.memory_space<vmem>>, vector<1x128xf32>
    %cst_37 = arith.constant dense<0.000000e+00> : vector<8x128xf32>
    %83 = tpu.matmul %79, %81, %cst_37 {dimension_numbers = #tpu.dot_dimension_numbers<[1], [0], [0], [1], [0, 0, 1, 1], [], []>} : vector<8x128xf32>, vector<128x128xf32>, vector<8x128xf32> -> vector<8x128xf32>
    %84 = vector.broadcast %82 : vector<1x128xf32> to vector<8x128xf32>
    %85 = arith.addf %83, %84 : vector<8x128xf32>
    %c0_38 = arith.constant 0 : index
    %c0_39 = arith.constant 0 : index
    %86 = vector.load %arg3[%c0_38, %c0_39] : memref<8x128xf32, #tpu.memory_space<vmem>>, vector<8x128xf32>
    tpu.vector_store %arg3[%c0_38, %c0_39], %85 {strides = array<i32>} : memref<8x128xf32, #tpu.memory_space<vmem>>, vector<8x128xf32>,
    return
  }
}

</mosaic_0001>

<llo_original>
// kernel: tpu_custom_call.1
$region0: #{tpu_custom_call.1}
  #allocation0 [shape = 'u32[]', space=smem, size = 0x4, offset = 0x4, fixed_abs, tag = 'smem constant byte address 0x4 - core index']
  #allocation1 [shape = 'u32[144,128]{1,0:T(1,128)}', space=vmem, size = 0x12000, scoped, tag = 'internal scratch']
  %s0 = inlined_call_operand.hbm [shape: f32[8,128], index: 0, kind: input, shape index: {}]
  %s1 = inlined_call_operand.hbm [shape: f32[3,128,128], index: 1, kind: input, shape index: {}]
  %s2 = inlined_call_operand.hbm [shape: f32[7,128], index: 2, kind: input, shape index: {}]
  %s3 = inlined_call_operand.hbm [shape: f32[8,128], index: 3, kind: output, shape index: {}]
  %s4 = sld [smem:[#allocation0]]
  $region34: #{tpu_custom_call.1} parent=0
    _
  %s6 = ssub.s32 1, %s4
  %s7 = scalar_select 0, %s6, %s4
  $region1: #{tpu_custom_call.1} parent=0
    #allocation2 [shape = 'u8[4096]{0}', space=vmem, size = 0x1000, scoped, tag = 'input window, operand 0, single buffered']
    #allocation3 [shape = 's32[1]{0}', space=sflag, size = 0x4, scoped, tag = 'scoped memory for tpu_custom_call.1']
    #allocation4 [shape = 's32[1]{0}', space=sflag, size = 0x4, scoped, tag = 'scoped memory for tpu_custom_call.1']
    #allocation5 [shape = 'u8[196608]{0}', space=vmem, size = 0x30000, scoped, tag = 'input window, operand 1, single buffered']
    #allocation6 [shape = 's32[1]{0}', space=sflag, size = 0x4, scoped, tag = 'scoped memory for tpu_custom_call.1']
    #allocation7 [shape = 'u8[4096]{0}', space=vmem, size = 0x1000, scoped, tag = 'input window, operand 2, single buffered']
    #allocation8 [shape = 'u8[4096]{0}', space=vmem, size = 0x1000, scoped, tag = 'output window, operand 0, single buffered']
    %8 = vsyncpa [#allocation3], 0
    %9 = vsyncpa [#allocation6], 0
    %10 = vsyncpa [#allocation4], 0
    // Predicated region
    $region2: #{tpu_custom_call.1} parent=1 // pred_check
      _
    $region3: #{tpu_custom_call.1} parent=1 // pred_check_branch
      %12 = sbr.rel (0) target = $region5
    $region4: #{tpu_custom_call.1} parent=1 // pred_region
      %s14 = ssub.s32 128, 128
      %15 = vsyncadd [#allocation3], %s14
      %s17 = sshll.u32 [#allocation2], 4
      %s18 = int_to_ptr.vmem [resolvable:$true] %s17
      %20 = dma.hbm_to_vmem [thread:$0]  %s0, 128, %s18, [#allocation3]
    $region5: #{tpu_custom_call.1} parent=1 // pred_fallthru
      _
    // Predicated region
    $region6: #{tpu_custom_call.1} parent=1 // pred_check
      _
    $region7: #{tpu_custom_call.1} parent=1 // pred_check_branch
      %22 = sbr.rel (0) target = $region9
    $region8: #{tpu_custom_call.1} parent=1 // pred_region
      %s24 = ssub.s32 6144, 6144
      %25 = vsyncadd [#allocation6], %s24
      %s26 = sshll.u32 [#allocation5], 4
      %s27 = int_to_ptr.vmem [resolvable:$true] %s26
      %32 = dma.hbm_to_vmem [thread:$0]  %s1, 6144, %s27, [#allocation6], 128, 128, 8
    $region9: #{tpu_custom_call.1} parent=1 // pred_fallthru
      _
    // Predicated region
    $region10: #{tpu_custom_call.1} parent=1 // pred_check
      _
    $region11: #{tpu_custom_call.1} parent=1 // pred_check_branch
      %34 = sbr.rel (0) target = $region13
    $region12: #{tpu_custom_call.1} parent=1 // pred_region
      %s36 = ssub.s32 128, 128
      %37 = vsyncadd [#allocation6], %s36
      %s39 = sshll.u32 [#allocation7], 4
      %s40 = int_to_ptr.vmem [resolvable:$true] %s39
      %42 = dma.hbm_to_vmem [thread:$0]  %s2, 128, %s40, [#allocation6]
    $region13: #{tpu_custom_call.1} parent=1 // pred_fallthru
      _
    // Predicated region
    $region14: #{tpu_custom_call.1} parent=1 // pred_check
      _
    $region15: #{tpu_custom_call.1} parent=1 // pred_check_branch
      %44 = sbr.rel (0) target = $region17
    $region16: #{tpu_custom_call.1} parent=1 // pred_region
      %45 = dma.done [#allocation3], 128
    $region17: #{tpu_custom_call.1} parent=1 // pred_fallthru
      _
    // Predicated region
    $region18: #{tpu_custom_call.1} parent=1 // pred_check
      _
    $region19: #{tpu_custom_call.1} parent=1 // pred_check_branch
      %47 = sbr.rel (0) target = $region21
    $region20: #{tpu_custom_call.1} parent=1 // pred_region
      %48 = dma.done [#allocation6], 6144
    $region21: #{tpu_custom_call.1} parent=1 // pred_fallthru
      _
    // Predicated region
    $region22: #{tpu_custom_call.1} parent=1 // pred_check
      _
    $region23: #{tpu_custom_call.1} parent=1 // pred_check_branch
      %50 = sbr.rel (0) target = $region25
    $region24: #{tpu_custom_call.1} parent=1 // pred_region
      %51 = dma.done [#allocation6], 128
    $region25: #{tpu_custom_call.1} parent=1 // pred_fallthru
      _
    %v52 = vlaneseq
    %v53 = vshrl.u32 %v52, 7
    %vm54 = vcmp.lt.s32.totalorder %v53, 4
    %v55 = vld [vmem:[#allocation2] sm:$0xff]
    %v56 = vld [vmem:[#allocation5] sm:$0xff]
    %v57 = vld [vmem:[#allocation5 + $0x8] sm:$0xff]
    %v58 = vld [vmem:[#allocation5 + $0x10] sm:$0xff]
    %v59 = vld [vmem:[#allocation5 + $0x18] sm:$0xff]
    %v60 = vld [vmem:[#allocation5 + $0x20] sm:$0xff]
    %v61 = vld [vmem:[#allocation5 + $0x28] sm:$0xff]
    %v62 = vld [vmem:[#allocation5 + $0x30] sm:$0xff]
    %v63 = vld [vmem:[#allocation5 + $0x38] sm:$0xff]
    %v64 = vld [vmem:[#allocation5 + $0x40] sm:$0xff]
    %v65 = vld [vmem:[#allocation5 + $0x48] sm:$0xff]
    %v66 = vld [vmem:[#allocation5 + $0x50] sm:$0xff]
    %v67 = vld [vmem:[#allocation5 + $0x58] sm:$0xff]
    %v68 = vld [vmem:[#allocation5 + $0x60] sm:$0xff]
    %v69 = vld [vmem:[#allocation5 + $0x68] sm:$0xff]
    %v70 = vld [vmem:[#allocation5 + $0x70] sm:$0xff]
    %v71 = vld [vmem:[#allocation5 + $0x78] sm:$0xff]
    %v72 = vld [vmem:[#allocation7] sm:$0x1]
    %v73 = vld [vmem:[#allocation7 + $0x1] sm:$0x1]
    %v74 = vld [vmem:[#allocation7 + $0x2] sm:$0x1]
    %v75 = vlaneseq
    %v76 = vshrl.u32 %v75, 7
    %v77 = vsub.s32 0, %v76
    %v78 = vrot.slane %v72, %v77
    %79 = vmatprep.subr.mxu0 0.0
    %80 = vmatpush1.msra.mxu0 %v71
    %81 = vmatprep.subr.mxu0 0.0
    %82 = vmatpush1.msra.mxu0 %v70
    %83 = vmatprep.subr.mxu0 0.0
    %84 = vmatpush1.msra.mxu0 %v69
    %85 = vmatprep.subr.mxu0 0.0
    %86 = vmatpush1.msra.mxu0 %v68
    %87 = vmatprep.subr.mxu0 0.0
    %88 = vmatpush1.msra.mxu0 %v67
    %89 = vmatprep.subr.mxu0 0.0
    %90 = vmatpush1.msra.mxu0 %v66
    %91 = vmatprep.subr.mxu0 0.0
    %92 = vmatpush1.msra.mxu0 %v65
    %93 = vmatprep.subr.mxu0 0.0
    %94 = vmatpush1.msra.mxu0 %v64
    %95 = vmatprep.subr.mxu0 0.0
    %96 = vmatpush1.msra.mxu0 %v63
    %97 = vmatprep.subr.mxu0 0.0
    %98 = vmatpush1.msra.mxu0 %v62
    %99 = vmatprep.subr.mxu0 0.0
    %100 = vmatpush1.msra.mxu0 %v61
    %101 = vmatprep.subr.mxu0 0.0
    %102 = vmatpush1.msra.mxu0 %v60
    %103 = vmatprep.subr.mxu0 0.0
    %104 = vmatpush1.msra.mxu0 %v59
    %105 = vmatprep.subr.mxu0 0.0
    %106 = vmatpush1.msra.mxu0 %v58
    %107 = vmatprep.subr.mxu0 0.0
    %108 = vmatpush1.msra.mxu0 %v57
    %109 = vmatprep.subr.mxu0 0.0
    %110 = vmatpush1.msra.mxu0 %v56
    %111 = vmatprep.subr.mxu0 0.0
    %112 = vmatpush2.msra.mxu0 0.0
    %113 = vmatprep.subr.mxu0 0.0
    %114 = vmatpush2.msra.mxu0 0.0
    %115 = vmatprep.subr.mxu0 0.0
    %116 = vmatpush2.msra.mxu0 0.0
    %117 = vmatprep.subr.mxu0 0.0
    %118 = vmatpush2.msra.mxu0 0.0
    %119 = vmatprep.subr.mxu0 0.0
    %120 = vmatpush2.msra.mxu0 0.0
    %121 = vmatprep.subr.mxu0 0.0
    %122 = vmatpush2.msra.mxu0 0.0
    %123 = vmatprep.subr.mxu0 0.0
    %124 = vmatpush2.msra.mxu0 0.0
    %125 = vmatprep.subr.mxu0 0.0
    %126 = vmatpush2.msra.mxu0 0.0
    %127 = vmatprep.subr.mxu0 0.0
    %128 = vmatpush2.msra.mxu0 0.0
    %129 = vmatprep.subr.mxu0 0.0
    %130 = vmatpush2.msra.mxu0 0.0
    %131 = vmatprep.subr.mxu0 0.0
    %132 = vmatpush2.msra.mxu0 0.0
    %133 = vmatprep.subr.mxu0 0.0
    %134 = vmatpush2.msra.mxu0 0.0
    %135 = vmatprep.subr.mxu0 0.0
    %136 = vmatpush2.msra.mxu0 0.0
    %137 = vmatprep.subr.mxu0 0.0
    %138 = vmatpush2.msra.mxu0 0.0
    %139 = vmatprep.subr.mxu0 0.0
    %140 = vmatpush2.msra.mxu0 0.0
    %141 = vmatprep.subr.mxu0 0.0
    %142 = vmatpush2.msra.mxu0 0.0
    %143 = vmatprep.mubr.f32.mxu0 0.0
    %144 = vmatmul.mubr.f32.gmra.mxu0 %v55
    %v145 = vpop.f32.mrf.mxu0
    %v146 = vadd.f32 %v78, %v145
    %v147 = vpop.f32.mrf.mxu0
    %148 = vdwg.mxu0
    %vm149 = vcmp.ge.f32.partialorder %v146, 0.0
    %v150 = vmul.f32 %v146, 0.01
    %v151 = vsel %vm149, %v146, %v150
    %v152 = vsel %vm54, %v151, 0.0
    %v153 = vrot.slane %v152, 4
    %v154 = vadd.f32 %v152, %v153
    %v155 = vrot.slane %v154, 2
    %v156 = vadd.f32 %v154, %v155
    %v157 = vrot.slane %v156, 1
    %v158 = vadd.f32 %v156, %v157
    %v159 = vmul.f32 %v158, 0.25
    %v160 = vsub.f32 %v151, %v159
    %v161 = vmul.f32 %v160, %v160
    %v162 = vsel %vm54, %v161, 0.0
    %v163 = vrot.slane %v162, 4
    %v164 = vadd.f32 %v162, %v163
    %v165 = vrot.slane %v164, 2
    %v166 = vadd.f32 %v164, %v165
    %v167 = vrot.slane %v166, 1
    %v168 = vadd.f32 %v166, %v167
    %v169 = vmul.f32 %v168, 0.25
    %v170 = vadd.f32 %v169, 1e-05
    %v171 = vrsqrt.pop %v170
    %v172 = vmul.f32 %v73, %v171
    %v173 = vmul.f32 %v159, %v172
    %v174 = vsub.f32 %v74, %v173
    %v175 = vlaneseq
    %v176 = vshrl.u32 %v175, 7
    %v177 = vsub.s32 0, %v176
    %v178 = vrot.slane %v172, %v177
    %v179 = vmul.f32 %v151, %v178
    %v180 = vlaneseq
    %v181 = vshrl.u32 %v180, 7
    %v182 = vsub.s32 0, %v181
    %v183 = vrot.slane %v174, %v182
    %v184 = vadd.f32 %v179, %v183
    %s185 = scalar_lea.vmem [#allocation5], 128
    %v186 = vld [vmem:[%s185] sm:$0xff]
    %v187 = vld [vmem:[%s185 + $0x8] sm:$0xff]
    %v188 = vld [vmem:[%s185 + $0x10] sm:$0xff]
    %v189 = vld [vmem:[%s185 + $0x18] sm:$0xff]
    %v190 = vld [vmem:[%s185 + $0x20] sm:$0xff]
    %v191 = vld [vmem:[%s185 + $0x28] sm:$0xff]
    %v192 = vld [vmem:[%s185 + $0x30] sm:$0xff]
    %v193 = vld [vmem:[%s185 + $0x38] sm:$0xff]
    %v194 = vld [vmem:[%s185 + $0x40] sm:$0xff]
    %v195 = vld [vmem:[%s185 + $0x48] sm:$0xff]
    %v196 = vld [vmem:[%s185 + $0x50] sm:$0xff]
    %v197 = vld [vmem:[%s185 + $0x58] sm:$0xff]
    %v198 = vld [vmem:[%s185 + $0x60] sm:$0xff]
    %v199 = vld [vmem:[%s185 + $0x68] sm:$0xff]
    %v200 = vld [vmem:[%s185 + $0x70] sm:$0xff]
    %v201 = vld [vmem:[%s185 + $0x78] sm:$0xff]
    %v202 = vld [vmem:[#allocation7 + $0x3] sm:$0x1]
    %v203 = vld [vmem:[#allocation7 + $0x4] sm:$0x1]
    %v204 = vld [vmem:[#allocation7 + $0x5] sm:$0x1]
    %v205 = vlaneseq
    %v206 = vshrl.u32 %v205, 7
    %v207 = vsub.s32 0, %v206
    %v208 = vrot.slane %v202, %v207
    %209 = vmatprep.subr.mxu0 0.0
    %210 = vmatpush1.msra.mxu0 %v201
    %211 = vmatprep.subr.mxu0 0.0
    %212 = vmatpush1.msra.mxu0 %v200
    %213 = vmatprep.subr.mxu0 0.0
    %214 = vmatpush1.msra.mxu0 %v199
    %215 = vmatprep.subr.mxu0 0.0
    %216 = vmatpush1.msra.mxu0 %v198
    %217 = vmatprep.subr.mxu0 0.0
    %218 = vmatpush1.msra.mxu0 %v197
    %219 = vmatprep.subr.mxu0 0.0
    %220 = vmatpush1.msra.mxu0 %v196
    %221 = vmatprep.subr.mxu0 0.0
    %222 = vmatpush1.msra.mxu0 %v195
    %223 = vmatprep.subr.mxu0 0.0
    %224 = vmatpush1.msra.mxu0 %v194
    %225 = vmatprep.subr.mxu0 0.0
    %226 = vmatpush1.msra.mxu0 %v193
    %227 = vmatprep.subr.mxu0 0.0
    %228 = vmatpush1.msra.mxu0 %v192
    %229 = vmatprep.subr.mxu0 0.0
    %230 = vmatpush1.msra.mxu0 %v191
    %231 = vmatprep.subr.mxu0 0.0
    %232 = vmatpush1.msra.mxu0 %v190
    %233 = vmatprep.subr.mxu0 0.0
    %234 = vmatpush1.msra.mxu0 %v189
    %235 = vmatprep.subr.mxu0 0.0
    %236 = vmatpush1.msra.mxu0 %v188
    %237 = vmatprep.subr.mxu0 0.0
    %238 = vmatpush1.msra.mxu0 %v187
    %239 = vmatprep.subr.mxu0 0.0
    %240 = vmatpush1.msra.mxu0 %v186
    %241 = vmatprep.subr.mxu0 0.0
    %242 = vmatpush2.msra.mxu0 0.0
    %243 = vmatprep.subr.mxu0 0.0
    %244 = vmatpush2.msra.mxu0 0.0
    %245 = vmatprep.subr.mxu0 0.0
    %246 = vmatpush2.msra.mxu0 0.0
    %247 = vmatprep.subr.mxu0 0.0
    %248 = vmatpush2.msra.mxu0 0.0
    %249 = vmatprep.subr.mxu0 0.0
    %250 = vmatpush2.msra.mxu0 0.0
    %251 = vmatprep.subr.mxu0 0.0
    %252 = vmatpush2.msra.mxu0 0.0
    %253 = vmatprep.subr.mxu0 0.0
    %254 = vmatpush2.msra.mxu0 0.0
    %255 = vmatprep.subr.mxu0 0.0
    %256 = vmatpush2.msra.mxu0 0.0
    %257 = vmatprep.subr.mxu0 0.0
    %258 = vmatpush2.msra.mxu0 0.0
    %259 = vmatprep.subr.mxu0 0.0
    %260 = vmatpush2.msra.mxu0 0.0
    %261 = vmatprep.subr.mxu0 0.0
    %262 = vmatpush2.msra.mxu0 0.0
    %263 = vmatprep.subr.mxu0 0.0
    %264 = vmatpush2.msra.mxu0 0.0
    %265 = vmatprep.subr.mxu0 0.0
    %266 = vmatpush2.msra.mxu0 0.0
    %267 = vmatprep.subr.mxu0 0.0
    %268 = vmatpush2.msra.mxu0 0.0
    %269 = vmatprep.subr.mxu0 0.0
    %270 = vmatpush2.msra.mxu0 0.0
    %271 = vmatprep.subr.mxu0 0.0
    %272 = vmatpush2.msra.mxu0 0.0
    %273 = vmatprep.mubr.f32.mxu0 0.0
    %274 = vmatmul.mubr.f32.gmra.mxu0 %v184
    %v275 = vpop.f32.mrf.mxu0
    %v276 = vadd.f32 %v208, %v275
    %v277 = vpop.f32.mrf.mxu0
    %278 = vdwg.mxu0
    %vm279 = vcmp.ge.f32.partialorder %v276, 0.0
    %v280 = vmul.f32 %v276, 0.01
    %v281 = vsel %vm279, %v276, %v280
    %v282 = vsel %vm54, %v281, 0.0
    %v283 = vrot.slane %v282, 4
    %v284 = vadd.f32 %v282, %v283
    %v285 = vrot.slane %v284, 2
    %v286 = vadd.f32 %v284, %v285
    %v287 = vrot.slane %v286, 1
    %v288 = vadd.f32 %v286, %v287
    %v289 = vmul.f32 %v288, 0.25
    %v290 = vsub.f32 %v281, %v289
    %v291 = vmul.f32 %v290, %v290
    %v292 = vsel %vm54, %v291, 0.0
    %v293 = vrot.slane %v292, 4
    %v294 = vadd.f32 %v292, %v293
    %v295 = vrot.slane %v294, 2
    %v296 = vadd.f32 %v294, %v295
    %v297 = vrot.slane %v296, 1
    %v298 = vadd.f32 %v296, %v297
    %v299 = vmul.f32 %v298, 0.25
    %v300 = vadd.f32 %v299, 1e-05
    %v301 = vrsqrt.pop %v300
    %v302 = vmul.f32 %v203, %v301
    %v303 = vmul.f32 %v289, %v302
    %v304 = vsub.f32 %v204, %v303
    %v305 = vlaneseq
    %v306 = vshrl.u32 %v305, 7
    %v307 = vsub.s32 0, %v306
    %v308 = vrot.slane %v302, %v307
    %v309 = vmul.f32 %v281, %v308
    %v310 = vlaneseq
    %v311 = vshrl.u32 %v310, 7
    %v312 = vsub.s32 0, %v311
    %v313 = vrot.slane %v304, %v312
    %v314 = vadd.f32 %v309, %v313
    %s315 = scalar_lea.vmem [#allocation5], 256
    %v316 = vld [vmem:[%s315] sm:$0xff]
    %v317 = vld [vmem:[%s315 + $0x8] sm:$0xff]
    %v318 = vld [vmem:[%s315 + $0x10] sm:$0xff]
    %v319 = vld [vmem:[%s315 + $0x18] sm:$0xff]
    %v320 = vld [vmem:[%s315 + $0x20] sm:$0xff]
    %v321 = vld [vmem:[%s315 + $0x28] sm:$0xff]
    %v322 = vld [vmem:[%s315 + $0x30] sm:$0xff]
    %v323 = vld [vmem:[%s315 + $0x38] sm:$0xff]
    %v324 = vld [vmem:[%s315 + $0x40] sm:$0xff]
    %v325 = vld [vmem:[%s315 + $0x48] sm:$0xff]
    %v326 = vld [vmem:[%s315 + $0x50] sm:$0xff]
    %v327 = vld [vmem:[%s315 + $0x58] sm:$0xff]
    %v328 = vld [vmem:[%s315 + $0x60] sm:$0xff]
    %v329 = vld [vmem:[%s315 + $0x68] sm:$0xff]
    %v330 = vld [vmem:[%s315 + $0x70] sm:$0xff]
    %v331 = vld [vmem:[%s315 + $0x78] sm:$0xff]
    %v332 = vld [vmem:[#allocation7 + $0x6] sm:$0x1]
    %v333 = vlaneseq
    %v334 = vshrl.u32 %v333, 7
    %v335 = vsub.s32 0, %v334
    %v336 = vrot.slane %v332, %v335
    %337 = vmatprep.subr.mxu0 0.0
    %338 = vmatpush1.msra.mxu0 %v331
    %339 = vmatprep.subr.mxu0 0.0
    %340 = vmatpush1.msra.mxu0 %v330
    %341 = vmatprep.subr.mxu0 0.0
    %342 = vmatpush1.msra.mxu0 %v329
    %343 = vmatprep.subr.mxu0 0.0
    %344 = vmatpush1.msra.mxu0 %v328
    %345 = vmatprep.subr.mxu0 0.0
    %346 = vmatpush1.msra.mxu0 %v327
    %347 = vmatprep.subr.mxu0 0.0
    %348 = vmatpush1.msra.mxu0 %v326
    %349 = vmatprep.subr.mxu0 0.0
    %350 = vmatpush1.msra.mxu0 %v325
    %351 = vmatprep.subr.mxu0 0.0
    %352 = vmatpush1.msra.mxu0 %v324
    %353 = vmatprep.subr.mxu0 0.0
    %354 = vmatpush1.msra.mxu0 %v323
    %355 = vmatprep.subr.mxu0 0.0
    %356 = vmatpush1.msra.mxu0 %v322
    %357 = vmatprep.subr.mxu0 0.0
    %358 = vmatpush1.msra.mxu0 %v321
    %359 = vmatprep.subr.mxu0 0.0
    %360 = vmatpush1.msra.mxu0 %v320
    %361 = vmatprep.subr.mxu0 0.0
    %362 = vmatpush1.msra.mxu0 %v319
    %363 = vmatprep.subr.mxu0 0.0
    %364 = vmatpush1.msra.mxu0 %v318
    %365 = vmatprep.subr.mxu0 0.0
    %366 = vmatpush1.msra.mxu0 %v317
    %367 = vmatprep.subr.mxu0 0.0
    %368 = vmatpush1.msra.mxu0 %v316
    %369 = vmatprep.subr.mxu0 0.0
    %370 = vmatpush2.msra.mxu0 0.0
    %371 = vmatprep.subr.mxu0 0.0
    %372 = vmatpush2.msra.mxu0 0.0
    %373 = vmatprep.subr.mxu0 0.0
    %374 = vmatpush2.msra.mxu0 0.0
    %375 = vmatprep.subr.mxu0 0.0
    %376 = vmatpush2.msra.mxu0 0.0
    %377 = vmatprep.subr.mxu0 0.0
    %378 = vmatpush2.msra.mxu0 0.0
    %379 = vmatprep.subr.mxu0 0.0
    %380 = vmatpush2.msra.mxu0 0.0
    %381 = vmatprep.subr.mxu0 0.0
    %382 = vmatpush2.msra.mxu0 0.0
    %383 = vmatprep.subr.mxu0 0.0
    %384 = vmatpush2.msra.mxu0 0.0
    %385 = vmatprep.subr.mxu0 0.0
    %386 = vmatpush2.msra.mxu0 0.0
    %387 = vmatprep.subr.mxu0 0.0
    %388 = vmatpush2.msra.mxu0 0.0
    %389 = vmatprep.subr.mxu0 0.0
    %390 = vmatpush2.msra.mxu0 0.0
    %391 = vmatprep.subr.mxu0 0.0
    %392 = vmatpush2.msra.mxu0 0.0
    %393 = vmatprep.subr.mxu0 0.0
    %394 = vmatpush2.msra.mxu0 0.0
    %395 = vmatprep.subr.mxu0 0.0
    %396 = vmatpush2.msra.mxu0 0.0
    %397 = vmatprep.subr.mxu0 0.0
    %398 = vmatpush2.msra.mxu0 0.0
    %399 = vmatprep.subr.mxu0 0.0
    %400 = vmatpush2.msra.mxu0 0.0
    %401 = vmatprep.mubr.f32.mxu0 0.0
    %402 = vmatmul.mubr.f32.gmra.mxu0 %v314
    %v403 = vpop.f32.mrf.mxu0
    %v404 = vadd.f32 %v336, %v403
    %v405 = vpop.f32.mrf.mxu0
    %406 = vdwg.mxu0
    %407 = vst [vmem:[#allocation8] sm:$0xff] %v404
    // Predicated region
    $region26: #{tpu_custom_call.1} parent=1 // pred_check
      _
    $region27: #{tpu_custom_call.1} parent=1 // pred_check_branch
      %409 = sbr.rel (0) target = $region29
    $region28: #{tpu_custom_call.1} parent=1 // pred_region
      %s411 = ssub.s32 128, 128
      %412 = vsyncadd [#allocation4], %s411
      %s414 = sshll.u32 [#allocation8], 4
      %s415 = int_to_ptr.vmem [resolvable:$true] %s414
      %417 = dma.vmem_to_hbm [thread:$0]  %s415, 128, %s3, [#allocation4]
    $region29: #{tpu_custom_call.1} parent=1 // pred_fallthru
      _
    // Predicated region
    $region30: #{tpu_custom_call.1} parent=1 // pred_check
      _
    $region31: #{tpu_custom_call.1} parent=1 // pred_check_branch
      %419 = sbr.rel (0) target = $region33
    $region32: #{tpu_custom_call.1} parent=1 // pred_region
      %420 = dma.done [#allocation4], 128
    $region33: #{tpu_custom_call.1} parent=1 // pred_fallthru
      _
    %421 = vsyncpa [#allocation3], 1
    %422 = vsyncpa [#allocation6], 1
    %423 = vsyncpa [#allocation4], 1

</llo_original>
